<compile_context>
chip_gen: v6e
topology: v6e:2x2x1
jax: 0.10.0
libtpu: 0.0.40
codegen_flags: <defaults>
</compile_context>

<pallas_src>
import functools
import math

import jax
import jax.numpy as jnp
from jax.experimental import pallas as pl
from jax.experimental.pallas import tpu as pltpu


def _round_up(x, m):
    return ((x + m - 1) // m) * m


def _piecewise_linear_kernel(y_ref, params_ref, o_ref, acc_ref, *,
                             td, d_rem, resident):
    k = pl.program_id(1)
    num_k = pl.num_programs(1)

    @pl.when(k == 0)
    def _():
        acc_ref[...] = jnp.zeros_like(acc_ref)

    # Compute in f32 regardless of input dtype.
    y = y_ref[...].astype(jnp.float32)                       # (tb, td)

    if resident:
        # Params are VMEM-resident as (3, D_pad); slice this k-chunk.
        dk = pl.multiple_of(k * td, td)
        p = params_ref[:, pl.ds(dk, td)]                     # (3, td) f32
    else:
        p = params_ref[...]                                  # (3, td) f32
    b1 = p[0:1, :]
    b2 = p[1:2, :]
    thr = p[2:3, :]

    shift = (b2 - b1) * thr
    util = jnp.where(y < thr, y * b1 + shift, y * b2)        # (tb, td) f32

    # Mask the out-of-bounds D-tail of the last k block (only emitted when the
    # feature dim is not a multiple of td; zero cost otherwise).
    if d_rem:
        lane = jax.lax.broadcasted_iota(jnp.int32, util.shape, 1)
        limit = jnp.where(k == num_k - 1, d_rem, td)
        util = jnp.where(lane < limit, util, 0.0)

    # Exact f32 lane-group reduction: tree-sum the td//128 lane groups in
    # registers (1 extra VALU add per data vreg), single lane-dense accumulate.
    groups = td // 128
    partial = util[:, 0:128]
    for g in range(1, groups):
        partial = partial + util[:, g * 128:(g + 1) * 128]
    acc_ref[...] += partial                                  # (tb, 128) f32

    @pl.when(k == num_k - 1)
    def _():
        # One cross-lane (XLU) reduce per B tile, then the narrow store.
        o_ref[...] = jnp.sum(acc_ref[...], axis=-1,
                             keepdims=True).astype(o_ref.dtype)


def piecewise_linear(y, beta1, beta2, thresholds, *, tile_b=1024, tile_d=2048):
    """y: (..., D); beta1/beta2/thresholds: (D,) -> (...) row sums of util."""
    batch_shape = y.shape[:-1]
    D = y.shape[-1]
    B = math.prod(batch_shape) if batch_shape else 1
    y2 = y.reshape(B, D)
    out_dtype = y.dtype

    # Lane tile: multiple of 128.  Batch tile: multiple of 8, capped so that
    # grid[0] >= 2 whenever possible (v7x megacore sharding of the parallel axis).
    td = min(int(tile_d), _round_up(D, 128))
    tb = min(int(tile_b), _round_up(pl.cdiv(B, 2), 8))

    grid_b = pl.cdiv(B, tb)
    num_k = pl.cdiv(D, td)
    D_pad = num_k * td
    d_rem = D % td

    # Tiny per-feature params: stack into (3, D) f32 and pad D only (zeros).
    params = jnp.stack([
        beta1.reshape(-1).astype(jnp.float32),
        beta2.reshape(-1).astype(jnp.float32),
        thresholds.reshape(-1).astype(jnp.float32),
    ], axis=0)
    if D_pad != D:
        params = jnp.pad(params, ((0, 0), (0, D_pad - D)))

    # Keep params fully VMEM-resident (fetched once) unless D is huge.
    resident = (3 * D_pad * 4 * 2) <= (4 * 1024 * 1024)
    if resident:
        params_spec = pl.BlockSpec((3, D_pad), lambda i, k: (0, 0))
    else:
        params_spec = pl.BlockSpec((3, td), lambda i, k: (0, k))

    kernel = functools.partial(_piecewise_linear_kernel,
                               td=td, d_rem=d_rem, resident=resident)

    itemsize = jnp.dtype(out_dtype).itemsize
    cost = pl.CostEstimate(
        flops=5 * B * D,
        transcendentals=0,
        bytes_accessed=B * D * itemsize + 3 * D * 4 + B * itemsize,
    )

    out = pl.pallas_call(
        kernel,
        out_shape=jax.ShapeDtypeStruct((B, 1), out_dtype),
        grid_spec=pltpu.PrefetchScalarGridSpec(
            num_scalar_prefetch=0,
            grid=(grid_b, num_k),
            in_specs=[
                pl.BlockSpec((tb, td), lambda i, k: (i, k)),   # Y stream
                params_spec,                                   # beta1/beta2/thr
            ],
            out_specs=pl.BlockSpec((tb, 1), lambda i, k: (i, 0)),
            scratch_shapes=[pltpu.VMEM((tb, 128), jnp.float32)],
        ),
        compiler_params=pltpu.CompilerParams(
            dimension_semantics=("parallel", "arbitrary"),
            vmem_limit_bytes=40 * 1024 * 1024),
        cost_estimate=cost,
    )(y2, params)

    return out[:, 0].reshape(batch_shape)


def piecewise_linear_ref(y, beta1, beta2, thresholds):
    """Pure-JAX reference matching the PyTorch module (f32 accumulation)."""
    yf = y.astype(jnp.float32)
    b1 = beta1.astype(jnp.float32)
    b2 = beta2.astype(jnp.float32)
    thr = thresholds.astype(jnp.float32)
    shift = (b2 - b1) * thr
    util = jnp.where(yf < thr, yf * b1 + shift, yf * b2)
    return util.sum(axis=-1).astype(y.dtype)


if __name__ == "__main__":
    key = jax.random.PRNGKey(0)
    k1, k2, k3, k4, k5, k6 = jax.random.split(key, 6)

    # Case 1: small aligned shapes (batch=16, 128 objective dims).
    B, D = 16, 128
    y = jax.random.normal(k1, (B, D), dtype=jnp.float32)
    beta1 = jax.random.uniform(k2, (D,), dtype=jnp.float32, minval=0.5, maxval=1.5)
    beta2 = jax.random.uniform(k3, (D,), dtype=jnp.float32, minval=1.5, maxval=3.0)
    thresholds = jax.random.normal(k4, (D,), dtype=jnp.float32) * 0.5

    out = jax.block_until_ready(piecewise_linear(y, beta1, beta2, thresholds))
    ref = piecewise_linear_ref(y, beta1, beta2, thresholds)
    assert out.shape == (B,)
    assert jnp.allclose(out, ref, rtol=1e-5, atol=1e-5), "mismatch vs reference"

    # Case 2: non-tile-aligned B and D (exercises in-kernel D-tail masking);
    # includes regions where beta1 > beta2 (so no convexity assumption).
    B2, D2 = 13, 200
    y2 = jax.random.normal(k5, (B2, D2), dtype=jnp.float32)
    b1_2 = jnp.linspace(1.5, 0.5, D2, dtype=jnp.float32)
    b2_2 = jnp.linspace(0.75, 2.0, D2, dtype=jnp.float32)
    thr_2 = jnp.linspace(-0.5, 0.5, D2, dtype=jnp.float32)
    out2 = jax.block_until_ready(piecewise_linear(y2, b1_2, b2_2, thr_2))
    ref2 = piecewise_linear_ref(y2, b1_2, b2_2, thr_2)
    assert out2.shape == (B2,)
    assert jnp.allclose(out2, ref2, rtol=1e-5, atol=1e-5), "mismatch (padding-free tail)"

    # Case 3: multi-step reduction axis, non-aligned D, bf16 input, forced
    # small tiles (exercises accumulator init/finalize across k and dtype path).
    B3, D3 = 40, 300
    y3 = jax.random.normal(k6, (B3, D3), dtype=jnp.float32).astype(jnp.bfloat16)
    b1_3 = jnp.linspace(0.5, 1.5, D3, dtype=jnp.float32)
    b2_3 = jnp.linspace(1.5, 3.0, D3, dtype=jnp.float32)
    thr_3 = jnp.linspace(-0.3, 0.3, D3, dtype=jnp.float32)
    out3 = jax.block_until_ready(
        piecewise_linear(y3, b1_3, b2_3, thr_3, tile_b=16, tile_d=128))
    ref3 = piecewise_linear_ref(y3, b1_3, b2_3, thr_3)
    assert out3.shape == (B3,)
    assert jnp.allclose(out3.astype(jnp.float32), ref3.astype(jnp.float32),
                        rtol=2e-2, atol=2e-2), "mismatch (bf16 / multi-k case)"

    print("KERNEL_OK")
</pallas_src>

<mosaic_0001>
module attributes {stable_mosaic.version = 11 : i64} {
  func.func @_piecewise_linear_kernel(%arg0: i32, %arg1: i32, %arg2: memref<8x128xf32, #tpu.memory_space<vmem>>, %arg3: memref<3x128xf32, #tpu.memory_space<vmem>>, %arg4: memref<8x1xf32, #tpu.memory_space<vmem>>, %arg5: memref<8x128xf32, #tpu.memory_space<vmem>>) attributes {dimension_semantics = [#tpu.dimension_semantics<parallel>, #tpu.dimension_semantics<arbitrary>], iteration_bounds = array<i64: 2, 1>, scalar_prefetch = 0 : i64, scratch_operands = 1 : i64, tpu.core_type = #tpu.core_type<tc>, window_params = [{transform_indices = @transform_0, window_bounds = array<i64: 8, 128>}, {pipeline_mode = #tpu.pipeline_mode<synchronous>, transform_indices = @transform_1, window_bounds = array<i64: 3, 128>}, {transform_indices = @transform_2, window_bounds = array<i64: 8, 1>}]} {
    %c0_i32 = arith.constant 0 : i32
    %0 = arith.cmpi eq, %arg1, %c0_i32 : i32
    %1 = arith.extui %0 : i1 to i32
    %c0_i32_0 = arith.constant 0 : i32
    %2 = arith.cmpi ne, %1, %c0_i32_0 : i32
    scf.if %2 {
      %cst = arith.constant 0.000000e+00 : f32
      %28 = vector.broadcast %cst : f32 to vector<8x128xf32>
      %c0_9 = arith.constant 0 : index
      %c0_10 = arith.constant 0 : index
      %29 = vector.load %arg5[%c0_9, %c0_10] : memref<8x128xf32, #tpu.memory_space<vmem>>, vector<8x128xf32>
      tpu.vector_store %arg5[%c0_9, %c0_10], %28 {strides = array<i32>} : memref<8x128xf32, #tpu.memory_space<vmem>>, vector<8x128xf32>,
    } else {
    }
    %c0 = arith.constant 0 : index
    %c0_1 = arith.constant 0 : index
    %3 = vector.load %arg2[%c0, %c0_1] : memref<8x128xf32, #tpu.memory_space<vmem>>, vector<8x128xf32>
    %c128_i32 = arith.constant 128 : i32
    %4 = arith.muli %arg1, %c128_i32 : i32
    %5 = tpu.assume_multiple %4, 128 : i32
    %c0_2 = arith.constant 0 : index
    %6 = arith.index_cast %5 : i32 to index
    %7 = vector.load %arg3[%c0_2, %6] : memref<3x128xf32, #tpu.memory_space<vmem>>, vector<3x128xf32>
    %8 = vector.extract_strided_slice %7 {offsets = [0, 0], sizes = [1, 128], strides = [1, 1]} : vector<3x128xf32> to vector<1x128xf32>
    %9 = vector.extract_strided_slice %7 {offsets = [1, 0], sizes = [1, 128], strides = [1, 1]} : vector<3x128xf32> to vector<1x128xf32>
    %10 = vector.extract_strided_slice %7 {offsets = [2, 0], sizes = [1, 128], strides = [1, 1]} : vector<3x128xf32> to vector<1x128xf32>
    %11 = arith.subf %9, %8 : vector<1x128xf32>
    %12 = arith.mulf %11, %10 : vector<1x128xf32>
    %13 = vector.broadcast %10 : vector<1x128xf32> to vector<8x128xf32>
    %14 = arith.cmpf olt, %3, %13 : vector<8x128xf32>
    %15 = vector.broadcast %8 : vector<1x128xf32> to vector<8x128xf32>
    %16 = arith.mulf %3, %15 : vector<8x128xf32>
    %17 = vector.broadcast %12 : vector<1x128xf32> to vector<8x128xf32>
    %18 = arith.addf %16, %17 : vector<8x128xf32>
    %19 = vector.broadcast %9 : vector<1x128xf32> to vector<8x128xf32>
    %20 = arith.mulf %3, %19 : vector<8x128xf32>
    %21 = arith.select %14, %18, %20 : vector<8x128xi1>, vector<8x128xf32>
    %c0_3 = arith.constant 0 : index
    %c0_4 = arith.constant 0 : index
    %22 = vector.load %arg5[%c0_3, %c0_4] : memref<8x128xf32, #tpu.memory_space<vmem>>, vector<8x128xf32>
    %23 = arith.addf %22, %21 : vector<8x128xf32>
    %c0_5 = arith.constant 0 : index
    %c0_6 = arith.constant 0 : index
    %24 = vector.load %arg5[%c0_5, %c0_6] : memref<8x128xf32, #tpu.memory_space<vmem>>, vector<8x128xf32>
    tpu.vector_store %arg5[%c0_5, %c0_6], %23 {strides = array<i32>} : memref<8x128xf32, #tpu.memory_space<vmem>>, vector<8x128xf32>,
    %c0_i32_7 = arith.constant 0 : i32
    %25 = arith.cmpi eq, %arg1, %c0_i32_7 : i32
    %26 = arith.extui %25 : i1 to i32
    %c0_i32_8 = arith.constant 0 : i32
    %27 = arith.cmpi ne, %26, %c0_i32_8 : i32
    scf.if %27 {
      %c0_9 = arith.constant 0 : index
      %c0_10 = arith.constant 0 : index
      %28 = vector.load %arg5[%c0_9, %c0_10] : memref<8x128xf32, #tpu.memory_space<vmem>>, vector<8x128xf32>
      %cst = arith.constant dense<0.000000e+00> : vector<8xf32>
      %29 = vector.multi_reduction <add>, %28, %cst [1] : vector<8x128xf32> to vector<8xf32>
      %30 = vector.shape_cast %29 : vector<8xf32> to vector<8x1xf32>
      %c0_11 = arith.constant 0 : index
      %c0_12 = arith.constant 0 : index
      %31 = vector.load %arg4[%c0_11, %c0_12] : memref<8x1xf32, #tpu.memory_space<vmem>>, vector<8x1xf32>
      tpu.vector_store %arg4[%c0_11, %c0_12], %30 {strides = array<i32>} : memref<8x1xf32, #tpu.memory_space<vmem>>, vector<8x1xf32>,
    } else {
    }
    return
  }
  func.func @transform_0(%arg0: i32, %arg1: i32) -> (i32, i32) {
    %c0_i32 = arith.constant 0 : i32
    return %arg0, %arg1 : i32, i32
  }
  func.func @transform_1(%arg0: i32, %arg1: i32) -> (i32, i32) {
    %c0_i32 = arith.constant 0 : i32
    %c0_i32_0 = arith.constant 0 : i32
    %c0_i32_1 = arith.constant 0 : i32
    return %c0_i32, %c0_i32_0 : i32, i32
  }
  func.func @transform_2(%arg0: i32, %arg1: i32) -> (i32, i32) {
    %c0_i32 = arith.constant 0 : i32
    %c0_i32_0 = arith.constant 0 : i32
    return %arg0, %c0_i32 : i32, i32
  }
}

</mosaic_0001>

<llo_original>
// kernel: tpu_custom_call.1
$region0: #{tpu_custom_call.1}
  #allocation0 [shape = 'u32[]', space=smem, size = 0x4, offset = 0x4, fixed_abs, tag = 'smem constant byte address 0x4 - core index']
  #allocation1 [shape = 'u32[144,128]{1,0:T(1,128)}', space=vmem, size = 0x12000, scoped, tag = 'internal scratch']
  #allocation2 [shape = 'f32[8,128]{1,0:T(8,128)}', space=vmem, size = 0x1000, scoped, tag = 'scratch operand']
  %s0 = inlined_call_operand.hbm [shape: f32[16,128], index: 0, kind: input, shape index: {}]
  %s1 = inlined_call_operand.hbm [shape: f32[3,128], index: 1, kind: input, shape index: {}]
  %s2 = inlined_call_operand.vmem [shape: f32[16,1], index: 2, kind: output, shape index: {}]
  %s3 = sld [smem:[#allocation0]]
  $region57: #{tpu_custom_call.1} parent=0
    _
  %s5 = ssub.s32 1, %s3
  %s6 = scalar_select 0, %s5, %s3
  $region1: #{tpu_custom_call.1} parent=0
    #allocation3 [shape = 'u8[8192]{0}', space=vmem, size = 0x2000, scoped, tag = 'input window, operand 0']
    #allocation4 [shape = 's32[2]{0}', space=sflag, size = 0x8, scoped, tag = 'scoped memory for tpu_custom_call.1']
    #allocation5 [shape = 'u8[2048]{0}', space=vmem, size = 0x800, scoped, tag = 'input window, operand 1, single buffered']
    #allocation6 [shape = 's32[1]{0}', space=sflag, size = 0x4, scoped, tag = 'scoped memory for tpu_custom_call.1']
    %7 = vsyncpa [#allocation4], 0
    %s8 = scalar_lea.sflag [#allocation4], 1
    %9 = vsyncpa %s8, 0
    %10 = vsyncpa [#allocation6], 0
    loop: start=0, step=1, limit=4
    $region2: #{tpu_custom_call.1} parent=1 // loop_pre_header
      _
    $region3: #{tpu_custom_call.1} parent=1 // loop_header
      %s12 = sphi 0, %s16
      %p13 = scmp.ge.s32.totalorder %s12, 4
      %s19 = sphi 0, %s31
      %s20 = sphi 0, %s27
      %s21 = sphi 0, %s19
      %s22 = sphi 0, %s20
      %s23 = sphi 0, %s21
      %s24 = sphi 0, %s22
      %s36 = sphi 0, %s38
      %s39 = sphi 0, %s36
      %s40 = sphi 0, %s39
      %s56 = sphi 0, %s40
      %s60 = sphi 0, %s60
      %s62 = sphi 0, %s60
      %s63 = sphi 0, %s62
      %s77 = sphi 0, %s63
      %s83 = sphi 0, %s85
      %s86 = sphi 0, %s83
      %s87 = sphi 0, %s86
      %s103 = sphi 0, %s87
    $region4: #{tpu_custom_call.1} parent=1 // loop_header_branch
      %15 = sbr.rel (%p13) target = $region8
    $region5: #{tpu_custom_call.1} parent=1 // loop_body
      %s17 = ssub.s32 %s12, 1
      %s18 = ssub.s32 %s12, 2
      %s25 = sadd.s32 1, %s20
      %p26 = scmp.ge.s32.totalorder %s25, 1
      %s27 = scalar_select %p26, 0, %s25
      %s28 = sadd.s32 1, %s19
      %s29 = scalar_select %p26, %s28, %s19
      %p30 = scmp.ge.s32.totalorder %s29, 2
      %s31 = scalar_select %p30, 0, %s29
      %s32 = ssub.s32 %s19, %s31
      %s33 = ssub.s32 %s20, %s27
      %s34 = sor.u32 %s32, %s33
      %p35 = scmp.eq.s32.totalorder %s34, 0
      %s37 = sadd.s32 %s36, 1
      %s38 = scalar_select %p35, %s36, %s37
      %p41 = pneg %p35
      %p42 = scmp.eq.s32.totalorder %s12, 1
      %p43 = por %p41, %p42
      %p44 = scmp.ne.s32.totalorder %s36, %s39
      %p45 = scmp.eq.s32.totalorder %s12, 0
      %p46 = por %p44, %p45
      %p47 = scmp.ne.s32.totalorder %s36, %s39
      %p48 = scmp.eq.s32.totalorder %s17, 1
      %p49 = por %p47, %p48
      %p50 = scmp.ne.s32.totalorder %s39, %s40
      %p51 = scmp.eq.s32.totalorder %s17, 0
      %p52 = por %p50, %p51
      %p53 = scmp.ne.s32.totalorder %s39, %s40
      %p54 = scmp.eq.s32.totalorder %s18, 1
      %p55 = por %p53, %p54
      %p57 = scmp.ne.s32.totalorder %s40, %s56
      %p58 = scmp.eq.s32.totalorder %s18, 0
      %p59 = por %p57, %p58
      %s61 = sadd.s32 %s60, 1
      %p64 = scmp.eq.s32.totalorder %s12, 1
      %p65 = scmp.ne.s32.totalorder %s60, %s62
      %p66 = scmp.eq.s32.totalorder %s12, 0
      %p67 = por %p65, %p66
      %p68 = scmp.ne.s32.totalorder %s60, %s62
      %p69 = scmp.eq.s32.totalorder %s17, 1
      %p70 = por %p68, %p69
      %p71 = scmp.ne.s32.totalorder %s62, %s63
      %p72 = scmp.eq.s32.totalorder %s17, 0
      %p73 = por %p71, %p72
      %p74 = scmp.ne.s32.totalorder %s62, %s63
      %p75 = scmp.eq.s32.totalorder %s18, 1
      %p76 = por %p74, %p75
      %p78 = scmp.ne.s32.totalorder %s63, %s77
      %p79 = scmp.eq.s32.totalorder %s18, 0
      %p80 = por %p78, %p79
      %s81 = ssub.s32 %s19, %s31
      %p82 = scmp.eq.s32.totalorder %s81, 0
      %s84 = sadd.s32 %s83, 1
      %s85 = scalar_select %p82, %s83, %s84
      %p88 = pneg %p82
      %p89 = scmp.eq.s32.totalorder %s12, 1
      %p90 = por %p88, %p89
      %p91 = scmp.ne.s32.totalorder %s83, %s86
      %p92 = scmp.eq.s32.totalorder %s12, 0
      %p93 = por %p91, %p92
      %p94 = scmp.ne.s32.totalorder %s83, %s86
      %p95 = scmp.eq.s32.totalorder %s17, 1
      %p96 = por %p94, %p95
      %p97 = scmp.ne.s32.totalorder %s86, %s87
      %p98 = scmp.eq.s32.totalorder %s17, 0
      %p99 = por %p97, %p98
      %p100 = scmp.ne.s32.totalorder %s86, %s87
      %p101 = scmp.eq.s32.totalorder %s18, 1
      %p102 = por %p100, %p101
      %p104 = scmp.ne.s32.totalorder %s87, %s103
      %p105 = scmp.eq.s32.totalorder %s18, 0
      %p106 = por %p104, %p105
      %p107 = scmp.le.s32.totalorder 1, %s12
      %p108 = scmp.lt.s32.totalorder %s12, 3
      %p109 = pnand %p107, %p108
      %p110 = pneg %p109
      // Predicated region
      $region9: #{tpu_custom_call.1} parent=5 // pred_check
        _
      $region10: #{tpu_custom_call.1} parent=5 // pred_check_branch
        %112 = sbr.rel (%p109) target = $region12
      $region11: #{tpu_custom_call.1} parent=5 // pred_region
        %s113 = ssub.s32 %s12, 1
        // Predicated region
        $region13: #{tpu_custom_call.1} parent=11 // pred_check
          %p114 = pneg %p73
        $region14: #{tpu_custom_call.1} parent=11 // pred_check_branch
          %116 = sbr.rel (%p114) target = $region16
        $region15: #{tpu_custom_call.1} parent=11 // pred_region
          %s118 = ssub.s32 64, 64
          %119 = vsyncadd [#allocation6], %s118
          %s121 = sshll.u32 [#allocation5], 4
          %s122 = int_to_ptr.vmem [resolvable:$true] %s121
          %124 = dma.hbm_to_vmem [thread:$0]  %s1, 64, %s122, [#allocation6]
        $region16: #{tpu_custom_call.1} parent=11 // pred_fallthru
          _
      $region12: #{tpu_custom_call.1} parent=5 // pred_fallthru
        _
      %p125 = scmp.lt.s32.totalorder %s12, 2
      // Predicated region
      $region17: #{tpu_custom_call.1} parent=5 // pred_check
        %p126 = pneg %p125
      $region18: #{tpu_custom_call.1} parent=5 // pred_check_branch
        %128 = sbr.rel (%p126) target = $region20
      $region19: #{tpu_custom_call.1} parent=5 // pred_region
        // Predicated region
        $region21: #{tpu_custom_call.1} parent=19 // pred_check
          %p129 = pneg %p46
        $region22: #{tpu_custom_call.1} parent=19 // pred_check_branch
          %131 = sbr.rel (%p129) target = $region24
        $region23: #{tpu_custom_call.1} parent=19 // pred_region
          %s132 = sand.u32 %s36, 1
          %s133 = scalar_lea.sflag [#allocation4], %s132
          %s134 = sand.u32 %s36, 1
          %s135 = smul.addr %s134, 8
          %s136 = scalar_lea.vmem [#allocation3], %s135
          %s138 = ssub.s32 128, 128
          %139 = vsyncadd %s133, %s138
          %s140 = sadd.s32 %s20, %s19
          %s141 = smul.addr %s140, 128
          %s142 = scalar_lea.hbm %s0, %s141
          %s144 = sshll.u32 %s136, 4
          %s145 = int_to_ptr.vmem [resolvable:$true] %s144
          %147 = dma.hbm_to_vmem [thread:$0]  %s142, 128, %s145, %s133
        $region24: #{tpu_custom_call.1} parent=19 // pred_fallthru
          _
      $region20: #{tpu_custom_call.1} parent=5 // pred_fallthru
        _
      %p148 = scmp.le.s32.totalorder 1, %s12
      %p149 = scmp.lt.s32.totalorder %s12, 3
      %p150 = pnand %p148, %p149
      %p151 = pneg %p150
      // Predicated region
      $region25: #{tpu_custom_call.1} parent=5 // pred_check
        _
      $region26: #{tpu_custom_call.1} parent=5 // pred_check_branch
        %153 = sbr.rel (%p150) target = $region28
      $region27: #{tpu_custom_call.1} parent=5 // pred_region
        %s154 = ssub.s32 %s12, 1
        %s155 = sand.u32 %s39, 1
        %s156 = scalar_lea.sflag [#allocation4], %s155
        %s157 = sand.u32 %s39, 1
        %s158 = smul.addr %s157, 8
        %s159 = scalar_lea.vmem [#allocation3], %s158
        // Predicated region
        $region29: #{tpu_custom_call.1} parent=27 // pred_check
          %p160 = pneg %p52
        $region30: #{tpu_custom_call.1} parent=27 // pred_check_branch
          %162 = sbr.rel (%p160) target = $region32
        $region31: #{tpu_custom_call.1} parent=27 // pred_region
          %163 = dma.done %s156, 128
        $region32: #{tpu_custom_call.1} parent=27 // pred_fallthru
          _
        // Predicated region
        $region33: #{tpu_custom_call.1} parent=27 // pred_check
          %p164 = pneg %p73
        $region34: #{tpu_custom_call.1} parent=27 // pred_check_branch
          %166 = sbr.rel (%p164) target = $region36
        $region35: #{tpu_custom_call.1} parent=27 // pred_region
          %167 = dma.done [#allocation6], 64
        $region36: #{tpu_custom_call.1} parent=27 // pred_fallthru
          _
        %s168 = sand.u32 %s39, 1
        %s169 = scalar_lea.sflag [#allocation4], %s168
        %s170 = sand.u32 %s39, 1
        %s171 = smul.addr %s170, 8
        %s172 = scalar_lea.vmem [#allocation3], %s171
        %p173 = pneg %p52
        %p174 = pneg %p49
        %p175 = pneg %p73
        %p176 = pneg %p70
        %p177 = pneg %p99
        %p178 = pneg %p96
        %p179 = scmp.lt.s32.totalorder %s21, 1
        %s180 = scalar_select %p179, %s21, 1
        %s181 = smul.addr %s180, 8
        %s182 = scalar_lea.vmem %s2, %s181
        %p183 = scmp.lt.s32.totalorder %s21, 1
        %s184 = scalar_select %p183, %s21, 1
        %s185 = smul.addr %s184, 8
        %s186 = scalar_lea.vmem %s2, %s185
        %p187 = scmp.eq.s32.totalorder %s22, 0
        // Predicated region
        $region37: #{tpu_custom_call.1} parent=27 // pred_check
          %p188 = pneg %p187
        $region38: #{tpu_custom_call.1} parent=27 // pred_check_branch
          %190 = sbr.rel (%p188) target = $region40
        $region39: #{tpu_custom_call.1} parent=27 // pred_region
          %191 = vst [vmem:[#allocation2] sm:$0xff] 0.0
        $region40: #{tpu_custom_call.1} parent=27 // pred_fallthru
          _
        %v192 = vld [vmem:[%s159] sm:$0xff]
        %s193 = smul.u32 %s22, 128
        %s194 = sshra.s32 %s193, 7
        %s195 = sand.u32 %s193, 127
        %s196 = scalar_lea.vmem [#allocation5], %s194
        %v197 = vld [vmem:[%s196] sm:$0x7]
        %v199 = vrot.slane %v197, 7
        %v201 = vsub.f32 %v197, %v199
        %v202 = vrot.slane %v197, 1
        %v204 = vmul.f32 %v201, %v202
        %v205 = vlaneseq
        %v206 = vshrl.u32 %v205, 7
        %v207 = vsub.s32 2, %v206
        %v208 = vrot.slane %v197, %v207
        %vm209 = vcmp.lt.f32.partialorder %v192, %v208
        %v210 = vlaneseq
        %v211 = vshrl.u32 %v210, 7
        %v212 = vsub.s32 0, %v211
        %v213 = vrot.slane %v197, %v212
        %v214 = vmul.f32 %v192, %v213
        %v215 = vlaneseq
        %v216 = vshrl.u32 %v215, 7
        %v217 = vsub.s32 1, %v216
        %v218 = vrot.slane %v204, %v217
        %v219 = vadd.f32 %v214, %v218
        %v220 = vlaneseq
        %v221 = vshrl.u32 %v220, 7
        %v222 = vsub.s32 1, %v221
        %v223 = vrot.slane %v197, %v222
        %v224 = vmul.f32 %v192, %v223
        %v225 = vsel %vm209, %v219, %v224
        %v226 = vld [vmem:[#allocation2] sm:$0xff]
        %v227 = vadd.f32 %v226, %v225
        %228 = vst [vmem:[#allocation2] sm:$0xff] %v227
        // Predicated region
        $region41: #{tpu_custom_call.1} parent=27 // pred_check
          %p229 = pneg %p187
        $region42: #{tpu_custom_call.1} parent=27 // pred_check_branch
          %231 = sbr.rel (%p229) target = $region44
        $region43: #{tpu_custom_call.1} parent=27 // pred_region
          %v232 = vld [vmem:[#allocation2] sm:$0xff]
          %233 = vadd.xlane.f32.xlu0 %v232
          %v234 = vpop.xlane.xlu0 %233
          %vm235 = vcmask 7168
          %236 = vst.msk [vmem:[%s186] sm:$0xff] %vm235, %v234
        $region44: #{tpu_custom_call.1} parent=27 // pred_fallthru
          _
        %p237 = scmp.lt.s32.totalorder %s21, 1
        %s238 = scalar_select %p237, %s21, 1
        %s239 = smul.addr %s238, 8
        %s240 = scalar_lea.vmem %s2, %s239
        // Predicated region
        $region45: #{tpu_custom_call.1} parent=27 // pred_check
          %p241 = pneg %p96
        $region46: #{tpu_custom_call.1} parent=27 // pred_check_branch
          %243 = sbr.rel (%p241) target = $region48
        $region47: #{tpu_custom_call.1} parent=27 // pred_region
          _
        $region48: #{tpu_custom_call.1} parent=27 // pred_fallthru
          _
      $region28: #{tpu_custom_call.1} parent=5 // pred_fallthru
        _
      %p244 = scmp.le.s32.totalorder 2, %s12
      // Predicated region
      $region49: #{tpu_custom_call.1} parent=5 // pred_check
        %p245 = pneg %p244
      $region50: #{tpu_custom_call.1} parent=5 // pred_check_branch
        %247 = sbr.rel (%p245) target = $region52
      $region51: #{tpu_custom_call.1} parent=5 // pred_region
        %s248 = ssub.s32 %s12, 2
        // Predicated region
        $region53: #{tpu_custom_call.1} parent=51 // pred_check
          %p249 = pneg %p102
        $region54: #{tpu_custom_call.1} parent=51 // pred_check_branch
          %251 = sbr.rel (%p249) target = $region56
        $region55: #{tpu_custom_call.1} parent=51 // pred_region
          %p252 = scmp.lt.s32.totalorder %s23, 1
          %s253 = scalar_select %p252, %s23, 1
          %s254 = smul.addr %s253, 8
          %s255 = scalar_lea.vmem %s2, %s254
        $region56: #{tpu_custom_call.1} parent=51 // pred_fallthru
          _
      $region52: #{tpu_custom_call.1} parent=5 // pred_fallthru
        _
    $region6: #{tpu_custom_call.1} parent=1 // loop_footer
      %s16 = sadd.s32 1, %s12
    $region7: #{tpu_custom_call.1} parent=1 // loop_footer_branch
      %11 = sbr.rel target = $region3
    $region8: #{tpu_custom_call.1} parent=1 // loop_exit
      _
    %256 = vsyncpa [#allocation4], 1
    %s257 = scalar_lea.sflag [#allocation4], 1
    %258 = vsyncpa %s257, 1
    %259 = vsyncpa [#allocation6], 1

</llo_original>
